<compile_context>
chip_gen: v7x
topology: tpu7x:2x2x1
jax: 0.10.0
libtpu: 0.0.40
codegen_flags: <defaults>
</compile_context>

<pallas_src>
import functools

import jax
import jax.numpy as jnp
from jax.experimental import pallas as pl
from jax.experimental.pallas import tpu as pltpu

SELU_ALPHA = 1.6732632423543772
SELU_SCALE = 1.0507009873554805


def _selu(x):
    # jnp.expm1 would be marginally more accurate near 0; jnp.exp is the
    # guaranteed-lowered EUP op in Mosaic, so keep exp(x) - 1.
    return SELU_SCALE * jnp.where(x > 0, x, SELU_ALPHA * (jnp.exp(x) - 1.0))


def _round_up(x, m):
    return ((x + m - 1) // m) * m


def _vmem_limit_bytes():
    """Generation-aware scoped VMEM limit.

    v7x (64 MiB physical) -> 48 MiB; v5e/v6e (128 MiB physical) -> 96 MiB.
    Falls back to the v7x-safe value if the query is unavailable.
    """
    phys = 64 * 1024 * 1024
    try:
        info = pltpu.get_tpu_info()
        cap = int(getattr(info, "vmem_capacity_bytes", 0) or 0)
        if cap > 0:
            phys = cap
    except Exception:
        pass
    return min(phys * 3 // 4, 100 * 1024 * 1024)


def _largest_div(q, cap):
    best = 1
    for d in range(1, min(q, cap) + 1):
        if q % d == 0:
            best = d
    return best


def _pick_tiles(n):
    """Return (Np, tile_m, tile_n) with tile_m | tile_n | Np, all multiples of 128.

    Nodes are padded only to a multiple of 128 (or +128 more if that unlocks a
    much larger column tile).  Column tile up to 2048, row tile up to 512.
    """
    base = _round_up(max(int(n), 1), 128)
    best = None
    for np_ in (base, base + 128):           # allow one extra 128 row of padding
        q = np_ // 128
        tn_units = _largest_div(q, 2048 // 128)
        key = (tn_units, -np_)
        if best is None or key > best[0]:
            best = (key, np_, tn_units)
    _, np_, tn_units = best
    tile_n = tn_units * 128
    tm_units = _largest_div(tn_units, 512 // 128)
    tile_m = tm_units * 128
    return np_, tile_m, tile_n


# ---------------------------------------------------------------------------
# Kernel 1a: GAT prepass — h = x @ W (bf16 MXU), per-node attention scores.
#   outputs: h (bf16, lane-padded), a_dst as (N,1), a_src lane-oriented (1,N)
# ---------------------------------------------------------------------------
def _gat_pre_kernel(x_ref, w_ref, asrc_ref, adst_ref, h_ref, sdst_ref, ssrc_ref):
    h = jnp.dot(x_ref[...], w_ref[...], preferred_element_type=jnp.float32)   # (T, Dp) f32
    sdst_ref[...] = jnp.sum(h * adst_ref[...], axis=-1, keepdims=True)        # (T, 1)
    a_src_col = jnp.sum(h * asrc_ref[...], axis=-1, keepdims=True)            # (T, 1)
    ssrc_ref[...] = jnp.transpose(a_src_col)                                  # (1, T) one-shot XLU
    h_ref[...] = h.astype(jnp.bfloat16)


# ---------------------------------------------------------------------------
# Kernel 1b: GAT attention + aggregation + bias + SELU.
# Softmax uses a precomputed per-row shift m_i (upper bound over edge scores),
# so there is no running max / rescale: just accumulate p-sums and p@h.
# ---------------------------------------------------------------------------
def _gat_attn_kernel(sdst_ref, ssrc_ref, m_ref, h_ref, adj_ref, bias_ref, out_ref,
                     l_sc, acc_sc, *, tile_n, h_resident):
    j = pl.program_id(1)

    @pl.when(j == 0)
    def _():
        l_sc[...] = jnp.zeros_like(l_sc)
        acc_sc[...] = jnp.zeros_like(acc_sc)

    # e[i, s] = LeakyReLU_0.2(a_dst[i] + a_src[s]); p = exp(e - m_i) on edges.
    e = sdst_ref[...] + ssrc_ref[...]            # (TM, TN) via broadcast
    e = jnp.maximum(e, 0.2 * e)                  # LeakyReLU(0.2), 2 VPU ops
    p = jnp.exp(e - m_ref[...])                  # <= 1 everywhere (m is an upper bound)
    p = jnp.where(adj_ref[...] > 0, p, 0.0)      # int8 mask, no f32 cast

    l_sc[...] += jnp.sum(p, axis=-1, keepdims=True)
    if h_resident:
        start = pl.multiple_of(j * tile_n, tile_n)
        h_blk = h_ref[pl.ds(start, tile_n), :]   # slice the VMEM-resident h
    else:
        h_blk = h_ref[...]
    acc_sc[...] += jnp.dot(p.astype(jnp.bfloat16), h_blk,
                           preferred_element_type=jnp.float32)

    @pl.when(j == pl.num_programs(1) - 1)
    def _():
        inv_l = pl.reciprocal(jnp.maximum(l_sc[...], 1e-30), approx=True)
        out_ref[...] = _selu(acc_sc[...] * inv_l + bias_ref[...]).astype(out_ref.dtype)


# ---------------------------------------------------------------------------
# Kernel 2: global_mean_pool (tiled over nodes) + SELU + fc1 + SELU
#           + (dropout=id) + fc2 + log_softmax
# ---------------------------------------------------------------------------
def _pool_mlp_kernel(pool_ref, h_ref, invc_ref, w1_ref, b1_ref, w2_ref, b2_ref,
                     out_ref, acc_ref):
    i = pl.program_id(0)

    @pl.when(i == 0)
    def _():
        acc_ref[...] = jnp.zeros_like(acc_ref)

    acc_ref[...] += jnp.dot(pool_ref[...], h_ref[...],
                            preferred_element_type=jnp.float32)

    @pl.when(i == pl.num_programs(0) - 1)
    def _():
        pooled = _selu(acc_ref[...] * invc_ref[...])                        # selu(mean_pool)
        hid = _selu(jnp.dot(pooled, w1_ref[...],
                            preferred_element_type=jnp.float32) + b1_ref[...])
        # TODO(synk): F.dropout(p=0.5) kept as identity (eval mode)
        logits = jnp.dot(hid, w2_ref[...],
                         preferred_element_type=jnp.float32) + b2_ref[...]
        z = logits - jnp.max(logits, axis=-1, keepdims=True)
        out_ref[...] = z - jnp.log(jnp.sum(jnp.exp(z), axis=-1, keepdims=True))


# ---------------------------------------------------------------------------
# Wrappers
# ---------------------------------------------------------------------------
def gat_layer(x, w_bf16, att_src, att_dst, bias, adj, Np, tile_m, tile_n, vmem_limit):
    Fin = x.shape[1]
    Dp = w_bf16.shape[1]
    n_row = Np // tile_m
    n_col = Np // tile_n

    # --- prepass: h = x @ W (bf16), a_dst (Np,1), a_src (1,Np) ---
    h, s_dst, s_src = pl.pallas_call(
        _gat_pre_kernel,
        out_shape=(jax.ShapeDtypeStruct((Np, Dp), jnp.bfloat16),
                   jax.ShapeDtypeStruct((Np, 1), jnp.float32),
                   jax.ShapeDtypeStruct((1, Np), jnp.float32)),
        grid_spec=pltpu.PrefetchScalarGridSpec(
            num_scalar_prefetch=0,
            grid=(n_row,),
            in_specs=[
                pl.BlockSpec((tile_m, Fin), lambda i: (i, 0)),
                pl.BlockSpec((Fin, Dp), lambda i: (0, 0)),
                pl.BlockSpec((1, Dp), lambda i: (0, 0)),
                pl.BlockSpec((1, Dp), lambda i: (0, 0)),
            ],
            out_specs=[
                pl.BlockSpec((tile_m, Dp), lambda i: (i, 0)),
                pl.BlockSpec((tile_m, 1), lambda i: (i, 0)),
                pl.BlockSpec((1, tile_m), lambda i: (0, i)),
            ],
        ),
        compiler_params=pltpu.CompilerParams(
            dimension_semantics=("parallel",),
            vmem_limit_bytes=vmem_limit),
    )(x, w_bf16, att_src, att_dst)

    # Per-row softmax shift: m_i = LeakyReLU(a_dst[i] + max_j a_src[j]).
    # LeakyReLU is monotone, so m_i >= every edge score of row i -> exp(e - m_i)
    # never overflows and the softmax ratio is exact (shift-invariant).
    t = s_dst + jnp.max(s_src)
    m_row = jnp.maximum(t, 0.2 * t)

    # Keep h fully VMEM-resident when it fits (avoids re-streaming h per row tile).
    h_resident = (2 * Np * Dp * 2) <= (vmem_limit // 3)
    h_spec = (pl.BlockSpec((Np, Dp), lambda i, j: (0, 0)) if h_resident
              else pl.BlockSpec((tile_n, Dp), lambda i, j: (j, 0)))

    flops = 2 * Np * Np * Dp + 7 * Np * Np
    h_stream = Np * Dp * 2 if h_resident else n_row * Np * Dp * 2
    bytes_accessed = (Np * Np          # int8 adjacency
                      + h_stream       # bf16 h
                      + Np * Dp * 2    # bf16 output
                      + Np * 16)       # scores / shift / bias

    kernel = functools.partial(_gat_attn_kernel, tile_n=tile_n, h_resident=h_resident)

    out = pl.pallas_call(
        kernel,
        out_shape=jax.ShapeDtypeStruct((Np, Dp), jnp.bfloat16),
        grid_spec=pltpu.PrefetchScalarGridSpec(
            num_scalar_prefetch=0,
            grid=(n_row, n_col),
            in_specs=[
                pl.BlockSpec((tile_m, 1), lambda i, j: (i, 0)),       # a_dst column
                pl.BlockSpec((1, tile_n), lambda i, j: (0, j)),       # a_src row (lane-dense)
                pl.BlockSpec((tile_m, 1), lambda i, j: (i, 0)),       # precomputed shift m_i
                h_spec,                                               # source features (bf16)
                pl.BlockSpec((tile_m, tile_n), lambda i, j: (i, j)),  # int8 adjacency tile
                pl.BlockSpec((1, Dp), lambda i, j: (0, 0)),           # bias
            ],
            out_specs=pl.BlockSpec((tile_m, Dp), lambda i, j: (i, 0)),
            scratch_shapes=[
                pltpu.VMEM((tile_m, 1), jnp.float32),    # running sum l
                pltpu.VMEM((tile_m, Dp), jnp.float32),   # accumulator
            ],
        ),
        compiler_params=pltpu.CompilerParams(
            dimension_semantics=("parallel", "arbitrary"),
            vmem_limit_bytes=vmem_limit),
        cost_estimate=pl.CostEstimate(
            flops=int(flops),
            transcendentals=int(Np * Np),
            bytes_accessed=int(bytes_accessed)),
    )(s_dst, s_src, m_row, h, adj, bias)
    return out


def pool_mlp_head(h, pool_mat, inv_counts, w1, b1, w2, b2, tile_m, vmem_limit):
    Np, Dp = h.shape
    G = pool_mat.shape[0]
    nhid = w1.shape[1]
    C = w2.shape[1]
    n_row = Np // tile_m
    return pl.pallas_call(
        _pool_mlp_kernel,
        out_shape=jax.ShapeDtypeStruct((G, C), jnp.float32),
        grid_spec=pltpu.PrefetchScalarGridSpec(
            num_scalar_prefetch=0,
            grid=(n_row,),
            in_specs=[
                pl.BlockSpec((G, tile_m), lambda i: (0, i)),     # one-hot pool (bf16, exact)
                pl.BlockSpec((tile_m, Dp), lambda i: (i, 0)),    # node features (bf16)
                pl.BlockSpec((G, 1), lambda i: (0, 0)),          # 1/|graph| (f32)
                pl.BlockSpec((Dp, nhid), lambda i: (0, 0)),
                pl.BlockSpec((1, nhid), lambda i: (0, 0)),
                pl.BlockSpec((nhid, C), lambda i: (0, 0)),
                pl.BlockSpec((1, C), lambda i: (0, 0)),
            ],
            out_specs=pl.BlockSpec((G, C), lambda i: (0, 0)),
            scratch_shapes=[pltpu.VMEM((G, Dp), jnp.float32)],
        ),
        compiler_params=pltpu.CompilerParams(
            dimension_semantics=("arbitrary",),
            vmem_limit_bytes=vmem_limit),
    )(pool_mat, h, inv_counts, w1, b1, w2, b2)


def gcnfn_forward(params, x, edge_index, batch, num_graphs):
    N, Fin = x.shape
    d = params["w1"].shape[1]                    # 2 * nhid
    # Pad the GAT feature dim to exactly 128 lanes (attention is VPU-bound;
    # padding wider only adds zero MXU work and HBM traffic).
    Dp = _round_up(d, 128)
    Np, tile_m, tile_n = _pick_tiles(N)
    vmem_limit = _vmem_limit_bytes()

    # ---- pad node features (bf16) / build int8 dense adjacency (+ self-loops) ----
    xp = jnp.zeros((Np, Fin), jnp.bfloat16).at[:N, :].set(x.astype(jnp.bfloat16))
    src, dst = edge_index[0], edge_index[1]
    # adj[target, source] = 1 iff edge source->target (dedups multi-edges).
    adj = jnp.zeros((Np, Np), jnp.int8).at[dst, src].set(1)
    diag = jnp.arange(N)
    adj = adj.at[diag, diag].set(1)              # PyG add_self_loops

    # ---- global_mean_pool: exact 0/1 one-hot (bf16) + f32 reciprocal counts ----
    batch_p = jnp.full((Np,), -1, jnp.int32).at[:N].set(batch.astype(jnp.int32))
    onehot = (batch_p[None, :] ==
              jnp.arange(num_graphs, dtype=jnp.int32)[:, None])
    counts = jnp.maximum(jnp.sum(onehot.astype(jnp.float32), axis=1, keepdims=True), 1.0)
    pool_mat = onehot.astype(jnp.bfloat16)
    inv_counts = 1.0 / counts                                        # (G, 1) f32

    # ---- pad params to lane-friendly shapes (zero padding keeps math exact) ----
    def pad_cols(a, cols):
        return jnp.zeros(a.shape[:-1] + (cols,), a.dtype).at[..., : a.shape[-1]].set(a)

    w1p = pad_cols(params["w1"], Dp).astype(jnp.bfloat16)                     # (Fin, Dp)
    w2p = jnp.zeros((Dp, Dp), jnp.float32).at[:d, :d].set(params["w2"])
    w2p = w2p.astype(jnp.bfloat16)                                            # (Dp, Dp)
    asrc1, adst1, bias1 = (pad_cols(params[k], Dp) for k in ("asrc1", "adst1", "bias1"))
    asrc2, adst2, bias2 = (pad_cols(params[k], Dp) for k in ("asrc2", "adst2", "bias2"))
    fc1_w = jnp.zeros((Dp, params["fc1_w"].shape[1]),
                      jnp.float32).at[:d, :].set(params["fc1_w"])

    h1 = gat_layer(xp, w1p, asrc1, adst1, bias1, adj, Np, tile_m, tile_n, vmem_limit)
    h2 = gat_layer(h1, w2p, asrc2, adst2, bias2, adj, Np, tile_m, tile_n, vmem_limit)
    return pool_mlp_head(h2, pool_mat, inv_counts, fc1_w, params["fc1_b"],
                         params["fc2_w"], params["fc2_b"], tile_m, vmem_limit)


# ---------------------------------------------------------------------------
# Pure-JAX reference (f32, dense) for correctness checking.
# ---------------------------------------------------------------------------
def _reference_forward(params, x, edge_index, batch, num_graphs):
    N = x.shape[0]
    src, dst = edge_index[0], edge_index[1]
    adj = jnp.zeros((N, N), jnp.float32).at[dst, src].set(1.0)
    adj = jnp.maximum(adj, jnp.eye(N, dtype=jnp.float32))

    def selu(v):
        return SELU_SCALE * jnp.where(v > 0, v, SELU_ALPHA * (jnp.exp(v) - 1.0))

    def gat(h_in, w, asrc, adst, bias):
        h = h_in @ w
        a_s = jnp.sum(h * asrc, axis=-1)
        a_d = jnp.sum(h * adst, axis=-1)
        e = a_d[:, None] + a_s[None, :]
        e = jnp.where(e > 0, e, 0.2 * e)
        e = jnp.where(adj > 0, e, -jnp.inf)
        alpha = jax.nn.softmax(e, axis=-1)
        return selu(alpha @ h + bias)

    h = gat(x, params["w1"], params["asrc1"], params["adst1"], params["bias1"])
    h = gat(h, params["w2"], params["asrc2"], params["adst2"], params["bias2"])
    onehot = (batch[None, :] == jnp.arange(num_graphs)[:, None]).astype(jnp.float32)
    pooled = selu((onehot / jnp.sum(onehot, axis=1, keepdims=True)) @ h)
    hid = selu(pooled @ params["fc1_w"] + params["fc1_b"])
    logits = hid @ params["fc2_w"] + params["fc2_b"]
    return jax.nn.log_softmax(logits, axis=-1)


def init_params(key, num_features, nhid, num_classes):
    d = 2 * nhid
    ks = jax.random.split(key, 10)
    return {
        # GATConv 1 (in=num_features, out=2*nhid, heads=1)
        "w1":    0.1 * jax.random.normal(ks[0], (num_features, d), jnp.float32),
        "asrc1": 0.1 * jax.random.normal(ks[1], (1, d), jnp.float32),
        "adst1": 0.1 * jax.random.normal(ks[2], (1, d), jnp.float32),
        "bias1": 0.1 * jax.random.normal(ks[3], (1, d), jnp.float32),
        # GATConv 2 (in=2*nhid, out=2*nhid)
        "w2":    0.1 * jax.random.normal(ks[4], (d, d), jnp.float32),
        "asrc2": 0.1 * jax.random.normal(ks[5], (1, d), jnp.float32),
        "adst2": 0.1 * jax.random.normal(ks[6], (1, d), jnp.float32),
        "bias2": 0.1 * jax.random.normal(ks[7], (1, d), jnp.float32),
        # fc1: Linear(2*nhid -> nhid); stored pre-transposed (in, out)
        "fc1_w": 0.1 * jax.random.normal(ks[8], (d, nhid), jnp.float32),
        "fc1_b": jnp.zeros((1, nhid), jnp.float32),
        # fc2: Linear(nhid -> num_classes); stored pre-transposed (in, out)
        "fc2_w": 0.1 * jax.random.normal(ks[9], (nhid, num_classes), jnp.float32),
        "fc2_b": jnp.zeros((1, num_classes), jnp.float32),
    }


if __name__ == "__main__":
    num_features, nhid, num_classes = 16, 16, 4
    nodes_per_graph, num_graphs = 16, 2
    N = nodes_per_graph * num_graphs

    key = jax.random.PRNGKey(0)
    k_x, k_p = jax.random.split(key)
    x = jax.random.normal(k_x, (N, num_features), jnp.float32)

    # Deterministic edges: bidirectional ring inside each graph.
    srcs, dsts = [], []
    for g in range(num_graphs):
        base = g * nodes_per_graph
        for i in range(nodes_per_graph):
            j = (i + 1) % nodes_per_graph
            srcs += [base + i, base + j]
            dsts += [base + j, base + i]
    edge_index = jnp.array([srcs, dsts], dtype=jnp.int32)              # (2, 64)
    batch = jnp.repeat(jnp.arange(num_graphs, dtype=jnp.int32), nodes_per_graph)

    params = init_params(k_p, num_features, nhid, num_classes)

    out = gcnfn_forward(params, x, edge_index, batch, num_graphs)
    out = jax.block_until_ready(out)
    assert out.shape == (num_graphs, num_classes)
    # log_softmax rows should (approximately) exponentiate-sum to 1
    assert jnp.allclose(jnp.sum(jnp.exp(out), axis=-1), 1.0, atol=1e-4)

    ref = _reference_forward(params, x, edge_index, batch, num_graphs)
    assert jnp.allclose(out, ref, atol=5e-2), (out, ref)

    print("KERNEL_OK")
</pallas_src>

<mosaic_0001>
module attributes {stable_mosaic.version = 11 : i64} {
  func.func @_gat_pre_kernel(%arg0: i32, %arg1: memref<256x16xbf16, #tpu.memory_space<vmem>>, %arg2: memref<16x128xbf16, #tpu.memory_space<vmem>>, %arg3: memref<1x128xf32, #tpu.memory_space<vmem>>, %arg4: memref<1x128xf32, #tpu.memory_space<vmem>>, %arg5: memref<256x128xbf16, #tpu.memory_space<vmem>>, %arg6: memref<256x1xf32, #tpu.memory_space<vmem>>, %arg7: memref<1x256xf32, #tpu.memory_space<vmem>>) attributes {dimension_semantics = [#tpu.dimension_semantics<parallel>], iteration_bounds = array<i64: 1>, scalar_prefetch = 0 : i64, scratch_operands = 0 : i64, tpu.core_type = #tpu.core_type<tc>, window_params = [{transform_indices = @transform_0, window_bounds = array<i64: 256, 16>}, {pipeline_mode = #tpu.pipeline_mode<synchronous>, transform_indices = @transform_1, window_bounds = array<i64: 16, 128>}, {pipeline_mode = #tpu.pipeline_mode<synchronous>, transform_indices = @transform_2, window_bounds = array<i64: 1, 128>}, {pipeline_mode = #tpu.pipeline_mode<synchronous>, transform_indices = @transform_3, window_bounds = array<i64: 1, 128>}, {transform_indices = @transform_4, window_bounds = array<i64: 256, 128>}, {transform_indices = @transform_5, window_bounds = array<i64: 256, 1>}, {transform_indices = @transform_6, window_bounds = array<i64: 1, 256>}]} {
    %c0 = arith.constant 0 : index
    %c0_0 = arith.constant 0 : index
    %0 = vector.load %arg1[%c0, %c0_0] : memref<256x16xbf16, #tpu.memory_space<vmem>>, vector<256x16xbf16>
    %c0_1 = arith.constant 0 : index
    %c0_2 = arith.constant 0 : index
    %1 = vector.load %arg2[%c0_1, %c0_2] : memref<16x128xbf16, #tpu.memory_space<vmem>>, vector<16x128xbf16>
    %cst = arith.constant dense<0.000000e+00> : vector<256x128xf32>
    %2 = tpu.matmul %0, %1, %cst {dimension_numbers = #tpu.dot_dimension_numbers<[1], [0], [0], [1], [0, 0, 1, 1], [], []>} : vector<256x16xbf16>, vector<16x128xbf16>, vector<256x128xf32> -> vector<256x128xf32>
    %c0_3 = arith.constant 0 : index
    %c0_4 = arith.constant 0 : index
    %3 = vector.load %arg4[%c0_3, %c0_4] : memref<1x128xf32, #tpu.memory_space<vmem>>, vector<1x128xf32>
    %4 = vector.broadcast %3 : vector<1x128xf32> to vector<256x128xf32>
    %5 = arith.mulf %2, %4 : vector<256x128xf32>
    %cst_5 = arith.constant dense<0.000000e+00> : vector<256xf32>
    %6 = vector.multi_reduction <add>, %5, %cst_5 [1] : vector<256x128xf32> to vector<256xf32>
    %7 = vector.shape_cast %6 : vector<256xf32> to vector<256x1xf32>
    %c0_6 = arith.constant 0 : index
    %c0_7 = arith.constant 0 : index
    %8 = vector.load %arg6[%c0_6, %c0_7] : memref<256x1xf32, #tpu.memory_space<vmem>>, vector<256x1xf32>
    tpu.vector_store %arg6[%c0_6, %c0_7], %7 {strides = array<i32>} : memref<256x1xf32, #tpu.memory_space<vmem>>, vector<256x1xf32>,
    %c0_8 = arith.constant 0 : index
    %c0_9 = arith.constant 0 : index
    %9 = vector.load %arg3[%c0_8, %c0_9] : memref<1x128xf32, #tpu.memory_space<vmem>>, vector<1x128xf32>
    %10 = vector.broadcast %9 : vector<1x128xf32> to vector<256x128xf32>
    %11 = arith.mulf %2, %10 : vector<256x128xf32>
    %cst_10 = arith.constant dense<0.000000e+00> : vector<256xf32>
    %12 = vector.multi_reduction <add>, %11, %cst_10 [1] : vector<256x128xf32> to vector<256xf32>
    %13 = vector.shape_cast %12 : vector<256xf32> to vector<256x1xf32>
    %14 = tpu.transpose %13, [1, 0] : vector<256x1xf32> -> vector<1x256xf32>
    %c0_11 = arith.constant 0 : index
    %c0_12 = arith.constant 0 : index
    %15 = vector.load %arg7[%c0_11, %c0_12] : memref<1x256xf32, #tpu.memory_space<vmem>>, vector<1x256xf32>
    tpu.vector_store %arg7[%c0_11, %c0_12], %14 {strides = array<i32>} : memref<1x256xf32, #tpu.memory_space<vmem>>, vector<1x256xf32>,
    %16 = arith.truncf %2 : vector<256x128xf32> to vector<256x128xbf16>
    %c0_13 = arith.constant 0 : index
    %c0_14 = arith.constant 0 : index
    %17 = vector.load %arg5[%c0_13, %c0_14] : memref<256x128xbf16, #tpu.memory_space<vmem>>, vector<256x128xbf16>
    tpu.vector_store %arg5[%c0_13, %c0_14], %16 {strides = array<i32>} : memref<256x128xbf16, #tpu.memory_space<vmem>>, vector<256x128xbf16>,
    return
  }
  func.func @transform_0(%arg0: i32) -> (i32, i32) {
    %c0_i32 = arith.constant 0 : i32
    %c0_i32_0 = arith.constant 0 : i32
    return %arg0, %c0_i32 : i32, i32
  }
  func.func @transform_1(%arg0: i32) -> (i32, i32) {
    %c0_i32 = arith.constant 0 : i32
    %c0_i32_0 = arith.constant 0 : i32
    %c0_i32_1 = arith.constant 0 : i32
    return %c0_i32, %c0_i32_0 : i32, i32
  }
  func.func @transform_2(%arg0: i32) -> (i32, i32) {
    %c0_i32 = arith.constant 0 : i32
    %c0_i32_0 = arith.constant 0 : i32
    %c0_i32_1 = arith.constant 0 : i32
    return %c0_i32, %c0_i32_0 : i32, i32
  }
  func.func @transform_3(%arg0: i32) -> (i32, i32) {
    %c0_i32 = arith.constant 0 : i32
    %c0_i32_0 = arith.constant 0 : i32
    %c0_i32_1 = arith.constant 0 : i32
    return %c0_i32, %c0_i32_0 : i32, i32
  }
  func.func @transform_4(%arg0: i32) -> (i32, i32) {
    %c0_i32 = arith.constant 0 : i32
    %c0_i32_0 = arith.constant 0 : i32
    return %arg0, %c0_i32 : i32, i32
  }
  func.func @transform_5(%arg0: i32) -> (i32, i32) {
    %c0_i32 = arith.constant 0 : i32
    %c0_i32_0 = arith.constant 0 : i32
    return %arg0, %c0_i32 : i32, i32
  }
  func.func @transform_6(%arg0: i32) -> (i32, i32) {
    %c0_i32 = arith.constant 0 : i32
    %c0_i32_0 = arith.constant 0 : i32
    return %c0_i32, %arg0 : i32, i32
  }
}

</mosaic_0001>

<llo_original>
// kernel: tpu_custom_call.1
$region0: #{tpu_custom_call.1}
  #allocation0 [shape = 'u32[]', space=smem, size = 0x4, offset = 0x4, fixed_abs, tag = 'smem constant byte address 0x4 - core index']
  #allocation1 [shape = 'u32[144,128]{1,0:T(1,128)}', space=vmem, size = 0x12000, scoped, tag = 'internal scratch']
  %s0 = inlined_call_operand.vmem [shape: bf16[256,16], index: 0, kind: input, shape index: {}]
  %s1 = inlined_call_operand.vmem [shape: bf16[16,128], index: 1, kind: input, shape index: {}]
  %s2 = inlined_call_operand.vmem [shape: f32[1,128], index: 2, kind: input, shape index: {}]
  %s3 = inlined_call_operand.vmem [shape: f32[1,128], index: 3, kind: input, shape index: {}]
  %s4 = inlined_call_operand.hbm [shape: bf16[256,128], index: 4, kind: output, shape index: {0}]
  %s5 = inlined_call_operand.vmem [shape: f32[256,1], index: 5, kind: output, shape index: {1}]
  %s6 = inlined_call_operand.hbm [shape: f32[1,256], index: 6, kind: output, shape index: {2}]
  %7 = xla_tuple %s4, %s5, %s6
  %s8 = sld [smem:[#allocation0]]
  $region42: #{tpu_custom_call.1} parent=0
    _
  %s10 = ssub.s32 1, %s8
  %s11 = scalar_select 0, %s10, %s8
  $region1: #{tpu_custom_call.1} parent=0
    #allocation2 [shape = 'u8[65536]{0}', space=vmem, size = 0x10000, scoped, tag = 'output window, operand 0, single buffered']
    #allocation3 [shape = 's32[1]{0}', space=sflag, size = 0x4, scoped, tag = 'scoped memory for tpu_custom_call.1']
    #allocation4 [shape = 'u8[1024]{0}', space=vmem, size = 0x400, scoped, tag = 'output window, operand 2, single buffered']
    #allocation5 [shape = 's32[1]{0}', space=sflag, size = 0x4, scoped, tag = 'scoped memory for tpu_custom_call.1']
    %12 = vsyncpa [#allocation3], 0
    %13 = vsyncpa [#allocation5], 0
    // Predicated region
    $region2: #{tpu_custom_call.1} parent=1 // pred_check
      _
    $region3: #{tpu_custom_call.1} parent=1 // pred_check_branch
      %15 = sbr.rel (0) target = $region5
    $region4: #{tpu_custom_call.1} parent=1 // pred_region
      _
    $region5: #{tpu_custom_call.1} parent=1 // pred_fallthru
      _
    // Predicated region
    $region6: #{tpu_custom_call.1} parent=1 // pred_check
      _
    $region7: #{tpu_custom_call.1} parent=1 // pred_check_branch
      %17 = sbr.rel (0) target = $region9
    $region8: #{tpu_custom_call.1} parent=1 // pred_region
      _
    $region9: #{tpu_custom_call.1} parent=1 // pred_fallthru
      _
    // Predicated region
    $region10: #{tpu_custom_call.1} parent=1 // pred_check
      _
    $region11: #{tpu_custom_call.1} parent=1 // pred_check_branch
      %19 = sbr.rel (0) target = $region13
    $region12: #{tpu_custom_call.1} parent=1 // pred_region
      _
    $region13: #{tpu_custom_call.1} parent=1 // pred_fallthru
      _
    // Predicated region
    $region14: #{tpu_custom_call.1} parent=1 // pred_check
      _
    $region15: #{tpu_custom_call.1} parent=1 // pred_check_branch
      %21 = sbr.rel (0) target = $region17
    $region16: #{tpu_custom_call.1} parent=1 // pred_region
      _
    $region17: #{tpu_custom_call.1} parent=1 // pred_fallthru
      _
    %v23 = vld [vmem:[%s0] sm:$0xf]
    %v24 = vld [vmem:[%s0 + $0x4] sm:$0xf]
    %v25 = vld [vmem:[%s0 + $0x8] sm:$0xf]
    %v26 = vld [vmem:[%s0 + $0xc] sm:$0xf]
    %v27 = vld [vmem:[%s0 + $0x10] sm:$0xf]
    %v28 = vld [vmem:[%s0 + $0x14] sm:$0xf]
    %v29 = vld [vmem:[%s0 + $0x18] sm:$0xf]
    %v30 = vld [vmem:[%s0 + $0x1c] sm:$0xf]
    %v31 = vld [vmem:[%s0 + $0x20] sm:$0xf]
    %v32 = vld [vmem:[%s0 + $0x24] sm:$0xf]
    %v33 = vld [vmem:[%s0 + $0x28] sm:$0xf]
    %v34 = vld [vmem:[%s0 + $0x2c] sm:$0xf]
    %v35 = vld [vmem:[%s0 + $0x30] sm:$0xf]
    %v36 = vld [vmem:[%s0 + $0x34] sm:$0xf]
    %v37 = vld [vmem:[%s0 + $0x38] sm:$0xf]
    %v38 = vld [vmem:[%s0 + $0x3c] sm:$0xf]
    %v39 = vld [vmem:[%s0 + $0x40] sm:$0xf]
    %v40 = vld [vmem:[%s0 + $0x44] sm:$0xf]
    %v41 = vld [vmem:[%s0 + $0x48] sm:$0xf]
    %v42 = vld [vmem:[%s0 + $0x4c] sm:$0xf]
    %v43 = vld [vmem:[%s0 + $0x50] sm:$0xf]
    %v44 = vld [vmem:[%s0 + $0x54] sm:$0xf]
    %v45 = vld [vmem:[%s0 + $0x58] sm:$0xf]
    %v46 = vld [vmem:[%s0 + $0x5c] sm:$0xf]
    %v47 = vld [vmem:[%s0 + $0x60] sm:$0xf]
    %v48 = vld [vmem:[%s0 + $0x64] sm:$0xf]
    %v49 = vld [vmem:[%s0 + $0x68] sm:$0xf]
    %v50 = vld [vmem:[%s0 + $0x6c] sm:$0xf]
    %v51 = vld [vmem:[%s0 + $0x70] sm:$0xf]
    %v52 = vld [vmem:[%s0 + $0x74] sm:$0xf]
    %v53 = vld [vmem:[%s0 + $0x78] sm:$0xf]
    %v54 = vld [vmem:[%s0 + $0x7c] sm:$0xf]
    %v55 = vld [vmem:[%s1] sm:$0xf]
    %v56 = vld [vmem:[%s1 + $0x4] sm:$0xf]
    %v89 = vunpack.c.l.b16 %v23
    %v90 = vunpack.c.l.b16 %v24
    %v91 = vunpack.c.l.b16 %v25
    %v92 = vunpack.c.l.b16 %v26
    %v93 = vunpack.c.l.b16 %v27
    %v94 = vunpack.c.l.b16 %v28
    %v95 = vunpack.c.l.b16 %v29
    %v96 = vunpack.c.l.b16 %v30
    %v97 = vunpack.c.l.b16 %v31
    %v98 = vunpack.c.l.b16 %v32
    %v99 = vunpack.c.l.b16 %v33
    %v100 = vunpack.c.l.b16 %v34
    %v101 = vunpack.c.l.b16 %v35
    %v102 = vunpack.c.l.b16 %v36
    %v103 = vunpack.c.l.b16 %v37
    %v104 = vunpack.c.l.b16 %v38
    %v105 = vunpack.c.l.b16 %v39
    %v106 = vunpack.c.l.b16 %v40
    %v107 = vunpack.c.l.b16 %v41
    %v108 = vunpack.c.l.b16 %v42
    %v109 = vunpack.c.l.b16 %v43
    %v110 = vunpack.c.l.b16 %v44
    %v111 = vunpack.c.l.b16 %v45
    %v112 = vunpack.c.l.b16 %v46
    %v113 = vunpack.c.l.b16 %v47
    %v114 = vunpack.c.l.b16 %v48
    %v115 = vunpack.c.l.b16 %v49
    %v116 = vunpack.c.l.b16 %v50
    %v117 = vunpack.c.l.b16 %v51
    %v118 = vunpack.c.l.b16 %v52
    %v119 = vunpack.c.l.b16 %v53
    %v120 = vunpack.c.l.b16 %v54
    %v121 = vpack.c.b16 %v90, %v89
    %v122 = vpack.c.b16 %v92, %v91
    %v123 = vpack.c.b16 %v94, %v93
    %v124 = vpack.c.b16 %v96, %v95
    %v125 = vpack.c.b16 %v98, %v97
    %v126 = vpack.c.b16 %v100, %v99
    %v127 = vpack.c.b16 %v102, %v101
    %v128 = vpack.c.b16 %v104, %v103
    %v129 = vpack.c.b16 %v106, %v105
    %v130 = vpack.c.b16 %v108, %v107
    %v131 = vpack.c.b16 %v110, %v109
    %v132 = vpack.c.b16 %v112, %v111
    %v133 = vpack.c.b16 %v114, %v113
    %v134 = vpack.c.b16 %v116, %v115
    %v135 = vpack.c.b16 %v118, %v117
    %v136 = vpack.c.b16 %v120, %v119
    %v139 = vunpack.c.l.b16 %v55
    %v140 = vunpack.c.l.b16 %v56
    %v141 = vpack.c.b16 %v140, %v139
    %vm143 = vcmask 130048
    %v145 = vsel %vm143, %v121, 0
    %v148 = vsel %vm143, %v122, 0
    %v151 = vsel %vm143, %v123, 0
    %v154 = vsel %vm143, %v124, 0
    %v157 = vsel %vm143, %v125, 0
    %v160 = vsel %vm143, %v126, 0
    %v163 = vsel %vm143, %v127, 0
    %v166 = vsel %vm143, %v128, 0
    %v169 = vsel %vm143, %v129, 0
    %v172 = vsel %vm143, %v130, 0
    %v175 = vsel %vm143, %v131, 0
    %v178 = vsel %vm143, %v132, 0
    %v181 = vsel %vm143, %v133, 0
    %v184 = vsel %vm143, %v134, 0
    %v187 = vsel %vm143, %v135, 0
    %v190 = vsel %vm143, %v136, 0
    %192 = vmatprep.subr.bf16.mxu0 0
    %193 = vmatpush1.bf16.msra.mxu0 %v141
    %194 = vmatprep.subr.bf16.mxu0 0
    %195 = vmatpush1.bf16.msra.mxu0 0
    %196 = vmatprep.subr.bf16.mxu0 0
    %197 = vmatpush1.bf16.msra.mxu0 0
    %198 = vmatprep.subr.bf16.mxu0 0
    %199 = vmatpush1.bf16.msra.mxu0 0
    %200 = vmatprep.subr.bf16.mxu0 0
    %201 = vmatpush1.bf16.msra.mxu0 0
    %202 = vmatprep.subr.bf16.mxu0 0
    %203 = vmatpush1.bf16.msra.mxu0 0
    %204 = vmatprep.subr.bf16.mxu0 0
    %205 = vmatpush1.bf16.msra.mxu0 0
    %206 = vmatprep.subr.bf16.mxu0 0
    %207 = vmatpush1.bf16.msra.mxu0 0
    %208 = vmatprep.subr.bf16.mxu0 0
    %209 = vmatpush1.bf16.msra.mxu0 0
    %210 = vmatprep.subr.bf16.mxu0 0
    %211 = vmatpush1.bf16.msra.mxu0 0
    %212 = vmatprep.subr.bf16.mxu0 0
    %213 = vmatpush1.bf16.msra.mxu0 0
    %214 = vmatprep.subr.bf16.mxu0 0
    %215 = vmatpush1.bf16.msra.mxu0 0
    %216 = vmatprep.subr.bf16.mxu0 0
    %217 = vmatpush1.bf16.msra.mxu0 0
    %218 = vmatprep.subr.bf16.mxu0 0
    %219 = vmatpush1.bf16.msra.mxu0 0
    %220 = vmatprep.subr.bf16.mxu0 0
    %221 = vmatpush1.bf16.msra.mxu0 0
    %222 = vmatprep.subr.bf16.mxu0 0
    %223 = vmatpush1.bf16.msra.mxu0 0
    %224 = vmatprep.mubr.bf16.mxu0 0
    %225 = vmatmul.mubr.bf16.gmra.mrb[0].mxu0 %v145
    %v226 = vpop.f32.mrb[0].mxu0
    %v227 = vadd.f32 0.0, %v226
    %v228 = vpop.f32.mrb[0].mxu0
    %v229 = vpop.f32.mrb[0].mxu0
    %v230 = vadd.f32 0.0, %v229
    %v231 = vpop.f32.mrb[0].mxu0
    %232 = vmatprep.mubr.bf16.mxu0 0
    %233 = vmatmul.mubr.bf16.gmra.mrb[0].mxu0 %v148
    %v234 = vpop.f32.mrb[0].mxu0
    %v235 = vadd.f32 0.0, %v234
    %v236 = vpop.f32.mrb[0].mxu0
    %v237 = vpop.f32.mrb[0].mxu0
    %v238 = vadd.f32 0.0, %v237
    %v239 = vpop.f32.mrb[0].mxu0
    %240 = vmatprep.mubr.bf16.mxu0 0
    %241 = vmatmul.mubr.bf16.gmra.mrb[0].mxu0 %v151
    %v242 = vpop.f32.mrb[0].mxu0
    %v243 = vadd.f32 0.0, %v242
    %v244 = vpop.f32.mrb[0].mxu0
    %v245 = vpop.f32.mrb[0].mxu0
    %v246 = vadd.f32 0.0, %v245
    %v247 = vpop.f32.mrb[0].mxu0
    %248 = vmatprep.mubr.bf16.mxu0 0
    %249 = vmatmul.mubr.bf16.gmra.mrb[0].mxu0 %v154
    %v250 = vpop.f32.mrb[0].mxu0
    %v251 = vadd.f32 0.0, %v250
    %v252 = vpop.f32.mrb[0].mxu0
    %v253 = vpop.f32.mrb[0].mxu0
    %v254 = vadd.f32 0.0, %v253
    %v255 = vpop.f32.mrb[0].mxu0
    %256 = vmatprep.mubr.bf16.mxu0 0
    %257 = vmatmul.mubr.bf16.gmra.mrb[0].mxu0 %v157
    %v258 = vpop.f32.mrb[0].mxu0
    %v259 = vadd.f32 0.0, %v258
    %v260 = vpop.f32.mrb[0].mxu0
    %v261 = vpop.f32.mrb[0].mxu0
    %v262 = vadd.f32 0.0, %v261
    %v263 = vpop.f32.mrb[0].mxu0
    %264 = vmatprep.mubr.bf16.mxu0 0
    %265 = vmatmul.mubr.bf16.gmra.mrb[0].mxu0 %v160
    %v266 = vpop.f32.mrb[0].mxu0
    %v267 = vadd.f32 0.0, %v266
    %v268 = vpop.f32.mrb[0].mxu0
    %v269 = vpop.f32.mrb[0].mxu0
    %v270 = vadd.f32 0.0, %v269
    %v271 = vpop.f32.mrb[0].mxu0
    %272 = vmatprep.mubr.bf16.mxu0 0
    %273 = vmatmul.mubr.bf16.gmra.mrb[0].mxu0 %v163
    %v274 = vpop.f32.mrb[0].mxu0
    %v275 = vadd.f32 0.0, %v274
    %v276 = vpop.f32.mrb[0].mxu0
    %v277 = vpop.f32.mrb[0].mxu0
    %v278 = vadd.f32 0.0, %v277
    %v279 = vpop.f32.mrb[0].mxu0
    %280 = vmatprep.mubr.bf16.mxu0 0
    %281 = vmatmul.mubr.bf16.gmra.mrb[0].mxu0 %v166
    %v282 = vpop.f32.mrb[0].mxu0
    %v283 = vadd.f32 0.0, %v282
    %v284 = vpop.f32.mrb[0].mxu0
    %v285 = vpop.f32.mrb[0].mxu0
    %v286 = vadd.f32 0.0, %v285
    %v287 = vpop.f32.mrb[0].mxu0
    %288 = vmatprep.mubr.bf16.mxu0 0
    %289 = vmatmul.mubr.bf16.gmra.mrb[0].mxu0 %v169
    %v290 = vpop.f32.mrb[0].mxu0
    %v291 = vadd.f32 0.0, %v290
    %v292 = vpop.f32.mrb[0].mxu0
    %v293 = vpop.f32.mrb[0].mxu0
    %v294 = vadd.f32 0.0, %v293
    %v295 = vpop.f32.mrb[0].mxu0
    %296 = vmatprep.mubr.bf16.mxu0 0
    %297 = vmatmul.mubr.bf16.gmra.mrb[0].mxu0 %v172
    %v298 = vpop.f32.mrb[0].mxu0
    %v299 = vadd.f32 0.0, %v298
    %v300 = vpop.f32.mrb[0].mxu0
    %v301 = vpop.f32.mrb[0].mxu0
    %v302 = vadd.f32 0.0, %v301
    %v303 = vpop.f32.mrb[0].mxu0
    %304 = vmatprep.mubr.bf16.mxu0 0
    %305 = vmatmul.mubr.bf16.gmra.mrb[0].mxu0 %v175
    %v306 = vpop.f32.mrb[0].mxu0
    %v307 = vadd.f32 0.0, %v306
    %v308 = vpop.f32.mrb[0].mxu0
    %v309 = vpop.f32.mrb[0].mxu0
    %v310 = vadd.f32 0.0, %v309
    %v311 = vpop.f32.mrb[0].mxu0
    %312 = vmatprep.mubr.bf16.mxu0 0
    %313 = vmatmul.mubr.bf16.gmra.mrb[0].mxu0 %v178
    %v314 = vpop.f32.mrb[0].mxu0
    %v315 = vadd.f32 0.0, %v314
    %v316 = vpop.f32.mrb[0].mxu0
    %v317 = vpop.f32.mrb[0].mxu0
    %v318 = vadd.f32 0.0, %v317
    %v319 = vpop.f32.mrb[0].mxu0
    %320 = vmatprep.mubr.bf16.mxu0 0
    %321 = vmatmul.mubr.bf16.gmra.mrb[0].mxu0 %v181
    %v322 = vpop.f32.mrb[0].mxu0
    %v323 = vadd.f32 0.0, %v322
    %v324 = vpop.f32.mrb[0].mxu0
    %v325 = vpop.f32.mrb[0].mxu0
    %v326 = vadd.f32 0.0, %v325
    %v327 = vpop.f32.mrb[0].mxu0
    %328 = vmatprep.mubr.bf16.mxu0 0
    %329 = vmatmul.mubr.bf16.gmra.mrb[0].mxu0 %v184
    %v330 = vpop.f32.mrb[0].mxu0
    %v331 = vadd.f32 0.0, %v330
    %v332 = vpop.f32.mrb[0].mxu0
    %v333 = vpop.f32.mrb[0].mxu0
    %v334 = vadd.f32 0.0, %v333
    %v335 = vpop.f32.mrb[0].mxu0
    %336 = vmatprep.mubr.bf16.mxu0 0
    %337 = vmatmul.mubr.bf16.gmra.mrb[0].mxu0 %v187
    %v338 = vpop.f32.mrb[0].mxu0
    %v339 = vadd.f32 0.0, %v338
    %v340 = vpop.f32.mrb[0].mxu0
    %v341 = vpop.f32.mrb[0].mxu0
    %v342 = vadd.f32 0.0, %v341
    %v343 = vpop.f32.mrb[0].mxu0
    %344 = vmatprep.mubr.bf16.mxu0 0
    %345 = vmatmul.mubr.bf16.gmra.mrb[0].mxu0 %v190
    %v346 = vpop.f32.mrb[0].mxu0
    %v347 = vadd.f32 0.0, %v346
    %v348 = vpop.f32.mrb[0].mxu0
    %v349 = vpop.f32.mrb[0].mxu0
    %v350 = vadd.f32 0.0, %v349
    %v351 = vpop.f32.mrb[0].mxu0
    %352 = vdwg.mxu0
    %v353 = vld [vmem:[%s3] sm:$0x1]
    %v355 = vlaneseq
    %v356 = vshrl.u32 %v355, 7
    %v357 = vsub.s32 0, %v356
    %v358 = vrot.slane %v353, %v357
    %v360 = vmul.f32 %v227, %v358
    %v361 = vmul.f32 %v230, %v358
    %v362 = vmul.f32 %v235, %v358
    %v363 = vmul.f32 %v238, %v358
    %v364 = vmul.f32 %v243, %v358
    %v365 = vmul.f32 %v246, %v358
    %v366 = vmul.f32 %v251, %v358
    %v367 = vmul.f32 %v254, %v358
    %v368 = vmul.f32 %v259, %v358
    %v369 = vmul.f32 %v262, %v358
    %v370 = vmul.f32 %v267, %v358
    %v371 = vmul.f32 %v270, %v358
    %v372 = vmul.f32 %v275, %v358
    %v373 = vmul.f32 %v278, %v358
    %v374 = vmul.f32 %v283, %v358
    %v375 = vmul.f32 %v286, %v358
    %v376 = vmul.f32 %v291, %v358
    %v377 = vmul.f32 %v294, %v358
    %v378 = vmul.f32 %v299, %v358
    %v379 = vmul.f32 %v302, %v358
    %v380 = vmul.f32 %v307, %v358
    %v381 = vmul.f32 %v310, %v358
    %v382 = vmul.f32 %v315, %v358
    %v383 = vmul.f32 %v318, %v358
    %v384 = vmul.f32 %v323, %v358
    %v385 = vmul.f32 %v326, %v358
    %v386 = vmul.f32 %v331, %v358
    %v387 = vmul.f32 %v334, %v358
    %v388 = vmul.f32 %v339, %v358
    %v389 = vmul.f32 %v342, %v358
    %v390 = vmul.f32 %v347, %v358
    %v391 = vmul.f32 %v350, %v358
    %392 = vadd.xlane.f32.xlu0 %v360
    %v393 = vpop.xlane.xlu0 %392
    %394 = vadd.xlane.f32.xlu0 %v361
    %v395 = vpop.xlane.xlu0 %394
    %396 = vadd.xlane.f32.xlu0 %v362
    %v397 = vpop.xlane.xlu0 %396
    %398 = vadd.xlane.f32.xlu0 %v363
    %v399 = vpop.xlane.xlu0 %398
    %400 = vadd.xlane.f32.xlu0 %v364
    %v401 = vpop.xlane.xlu0 %400
    %402 = vadd.xlane.f32.xlu0 %v365
    %v403 = vpop.xlane.xlu0 %402
    %404 = vadd.xlane.f32.xlu0 %v366
    %v405 = vpop.xlane.xlu0 %404
    %406 = vadd.xlane.f32.xlu0 %v367
    %v407 = vpop.xlane.xlu0 %406
    %408 = vadd.xlane.f32.xlu0 %v368
    %v409 = vpop.xlane.xlu0 %408
    %410 = vadd.xlane.f32.xlu0 %v369
    %v411 = vpop.xlane.xlu0 %410
    %412 = vadd.xlane.f32.xlu0 %v370
    %v413 = vpop.xlane.xlu0 %412
    %414 = vadd.xlane.f32.xlu0 %v371
    %v415 = vpop.xlane.xlu0 %414
    %416 = vadd.xlane.f32.xlu0 %v372
    %v417 = vpop.xlane.xlu0 %416
    %418 = vadd.xlane.f32.xlu0 %v373
    %v419 = vpop.xlane.xlu0 %418
    %420 = vadd.xlane.f32.xlu0 %v374
    %v421 = vpop.xlane.xlu0 %420
    %422 = vadd.xlane.f32.xlu0 %v375
    %v423 = vpop.xlane.xlu0 %422
    %424 = vadd.xlane.f32.xlu0 %v376
    %v425 = vpop.xlane.xlu0 %424
    %426 = vadd.xlane.f32.xlu0 %v377
    %v427 = vpop.xlane.xlu0 %426
    %428 = vadd.xlane.f32.xlu0 %v378
    %v429 = vpop.xlane.xlu0 %428
    %430 = vadd.xlane.f32.xlu0 %v379
    %v431 = vpop.xlane.xlu0 %430
    %432 = vadd.xlane.f32.xlu0 %v380
    %v433 = vpop.xlane.xlu0 %432
    %434 = vadd.xlane.f32.xlu0 %v381
    %v435 = vpop.xlane.xlu0 %434
    %436 = vadd.xlane.f32.xlu0 %v382
    %v437 = vpop.xlane.xlu0 %436
    %438 = vadd.xlane.f32.xlu0 %v383
    %v439 = vpop.xlane.xlu0 %438
    %440 = vadd.xlane.f32.xlu0 %v384
    %v441 = vpop.xlane.xlu0 %440
    %442 = vadd.xlane.f32.xlu0 %v385
    %v443 = vpop.xlane.xlu0 %442
    %444 = vadd.xlane.f32.xlu0 %v386
    %v445 = vpop.xlane.xlu0 %444
    %446 = vadd.xlane.f32.xlu0 %v387
    %v447 = vpop.xlane.xlu0 %446
    %448 = vadd.xlane.f32.xlu0 %v388
    %v449 = vpop.xlane.xlu0 %448
    %450 = vadd.xlane.f32.xlu0 %v389
    %v451 = vpop.xlane.xlu0 %450
    %452 = vadd.xlane.f32.xlu0 %v390
    %v453 = vpop.xlane.xlu0 %452
    %454 = vadd.xlane.f32.xlu0 %v391
    %v455 = vpop.xlane.xlu0 %454
    %vm456 = vcmask 7168
    %457 = vst.msk [vmem:[%s5] sm:$0xff] %vm456, %v393
    %458 = vst.msk [vmem:[%s5 + $0x8] sm:$0xff] %vm456, %v395
    %459 = vst.msk [vmem:[%s5 + $0x10] sm:$0xff] %vm456, %v397
    %460 = vst.msk [vmem:[%s5 + $0x18] sm:$0xff] %vm456, %v399
    %461 = vst.msk [vmem:[%s5 + $0x20] sm:$0xff] %vm456, %v401
    %462 = vst.msk [vmem:[%s5 + $0x28] sm:$0xff] %vm456, %v403
    %463 = vst.msk [vmem:[%s5 + $0x30] sm:$0xff] %vm456, %v405
    %464 = vst.msk [vmem:[%s5 + $0x38] sm:$0xff] %vm456, %v407
    %465 = vst.msk [vmem:[%s5 + $0x40] sm:$0xff] %vm456, %v409
    %466 = vst.msk [vmem:[%s5 + $0x48] sm:$0xff] %vm456, %v411
    %467 = vst.msk [vmem:[%s5 + $0x50] sm:$0xff] %vm456, %v413
    %468 = vst.msk [vmem:[%s5 + $0x58] sm:$0xff] %vm456, %v415
    %469 = vst.msk [vmem:[%s5 + $0x60] sm:$0xff] %vm456, %v417
    %470 = vst.msk [vmem:[%s5 + $0x68] sm:$0xff] %vm456, %v419
    %471 = vst.msk [vmem:[%s5 + $0x70] sm:$0xff] %vm456, %v421
    %472 = vst.msk [vmem:[%s5 + $0x78] sm:$0xff] %vm456, %v423
    %473 = vst.msk [vmem:[%s5 + $0x80] sm:$0xff] %vm456, %v425
    %474 = vst.msk [vmem:[%s5 + $0x88] sm:$0xff] %vm456, %v427
    %475 = vst.msk [vmem:[%s5 + $0x90] sm:$0xff] %vm456, %v429
    %476 = vst.msk [vmem:[%s5 + $0x98] sm:$0xff] %vm456, %v431
    %477 = vst.msk [vmem:[%s5 + $0xa0] sm:$0xff] %vm456, %v433
    %478 = vst.msk [vmem:[%s5 + $0xa8] sm:$0xff] %vm456, %v435
    %479 = vst.msk [vmem:[%s5 + $0xb0] sm:$0xff] %vm456, %v437
    %480 = vst.msk [vmem:[%s5 + $0xb8] sm:$0xff] %vm456, %v439
    %481 = vst.msk [vmem:[%s5 + $0xc0] sm:$0xff] %vm456, %v441
    %482 = vst.msk [vmem:[%s5 + $0xc8] sm:$0xff] %vm456, %v443
    %483 = vst.msk [vmem:[%s5 + $0xd0] sm:$0xff] %vm456, %v445
    %484 = vst.msk [vmem:[%s5 + $0xd8] sm:$0xff] %vm456, %v447
    %485 = vst.msk [vmem:[%s5 + $0xe0] sm:$0xff] %vm456, %v449
    %486 = vst.msk [vmem:[%s5 + $0xe8] sm:$0xff] %vm456, %v451
    %487 = vst.msk [vmem:[%s5 + $0xf0] sm:$0xff] %vm456, %v453
    %488 = vst.msk [vmem:[%s5 + $0xf8] sm:$0xff] %vm456, %v455
    %v489 = vld [vmem:[%s2] sm:$0x1]
    %v491 = vlaneseq
    %v492 = vshrl.u32 %v491, 7
    %v493 = vsub.s32 0, %v492
    %v494 = vrot.slane %v489, %v493
    %v496 = vmul.f32 %v227, %v494
    %v497 = vmul.f32 %v230, %v494
    %v498 = vmul.f32 %v235, %v494
    %v499 = vmul.f32 %v238, %v494
    %v500 = vmul.f32 %v243, %v494
    %v501 = vmul.f32 %v246, %v494
    %v502 = vmul.f32 %v251, %v494
    %v503 = vmul.f32 %v254, %v494
    %v504 = vmul.f32 %v259, %v494
    %v505 = vmul.f32 %v262, %v494
    %v506 = vmul.f32 %v267, %v494
    %v507 = vmul.f32 %v270, %v494
    %v508 = vmul.f32 %v275, %v494
    %v509 = vmul.f32 %v278, %v494
    %v510 = vmul.f32 %v283, %v494
    %v511 = vmul.f32 %v286, %v494
    %v512 = vmul.f32 %v291, %v494
    %v513 = vmul.f32 %v294, %v494
    %v514 = vmul.f32 %v299, %v494
    %v515 = vmul.f32 %v302, %v494
    %v516 = vmul.f32 %v307, %v494
    %v517 = vmul.f32 %v310, %v494
    %v518 = vmul.f32 %v315, %v494
    %v519 = vmul.f32 %v318, %v494
    %v520 = vmul.f32 %v323, %v494
    %v521 = vmul.f32 %v326, %v494
    %v522 = vmul.f32 %v331, %v494
    %v523 = vmul.f32 %v334, %v494
    %v524 = vmul.f32 %v339, %v494
    %v525 = vmul.f32 %v342, %v494
    %v526 = vmul.f32 %v347, %v494
    %v527 = vmul.f32 %v350, %v494
    %528 = vadd.xlane.f32.xlu0 %v496
    %v529 = vpop.xlane.xlu0 %528
    %530 = vadd.xlane.f32.xlu0 %v497
    %v531 = vpop.xlane.xlu0 %530
    %532 = vadd.xlane.f32.xlu0 %v498
    %v533 = vpop.xlane.xlu0 %532
    %534 = vadd.xlane.f32.xlu0 %v499
    %v535 = vpop.xlane.xlu0 %534
    %536 = vadd.xlane.f32.xlu0 %v500
    %v537 = vpop.xlane.xlu0 %536
    %538 = vadd.xlane.f32.xlu0 %v501
    %v539 = vpop.xlane.xlu0 %538
    %540 = vadd.xlane.f32.xlu0 %v502
    %v541 = vpop.xlane.xlu0 %540
    %542 = vadd.xlane.f32.xlu0 %v503
    %v543 = vpop.xlane.xlu0 %542
    %544 = vadd.xlane.f32.xlu0 %v504
    %v545 = vpop.xlane.xlu0 %544
    %546 = vadd.xlane.f32.xlu0 %v505
    %v547 = vpop.xlane.xlu0 %546
    %548 = vadd.xlane.f32.xlu0 %v506
    %v549 = vpop.xlane.xlu0 %548
    %550 = vadd.xlane.f32.xlu0 %v507
    %v551 = vpop.xlane.xlu0 %550
    %552 = vadd.xlane.f32.xlu0 %v508
    %v553 = vpop.xlane.xlu0 %552
    %554 = vadd.xlane.f32.xlu0 %v509
    %v555 = vpop.xlane.xlu0 %554
    %556 = vadd.xlane.f32.xlu0 %v510
    %v557 = vpop.xlane.xlu0 %556
    %558 = vadd.xlane.f32.xlu0 %v511
    %v559 = vpop.xlane.xlu0 %558
    %560 = vadd.xlane.f32.xlu0 %v512
    %v561 = vpop.xlane.xlu0 %560
    %562 = vadd.xlane.f32.xlu0 %v513
    %v563 = vpop.xlane.xlu0 %562
    %564 = vadd.xlane.f32.xlu0 %v514
    %v565 = vpop.xlane.xlu0 %564
    %566 = vadd.xlane.f32.xlu0 %v515
    %v567 = vpop.xlane.xlu0 %566
    %568 = vadd.xlane.f32.xlu0 %v516
    %v569 = vpop.xlane.xlu0 %568
    %570 = vadd.xlane.f32.xlu0 %v517
    %v571 = vpop.xlane.xlu0 %570
    %572 = vadd.xlane.f32.xlu0 %v518
    %v573 = vpop.xlane.xlu0 %572
    %574 = vadd.xlane.f32.xlu0 %v519
    %v575 = vpop.xlane.xlu0 %574
    %576 = vadd.xlane.f32.xlu0 %v520
    %v577 = vpop.xlane.xlu0 %576
    %578 = vadd.xlane.f32.xlu0 %v521
    %v579 = vpop.xlane.xlu0 %578
    %580 = vadd.xlane.f32.xlu0 %v522
    %v581 = vpop.xlane.xlu0 %580
    %582 = vadd.xlane.f32.xlu0 %v523
    %v583 = vpop.xlane.xlu0 %582
    %584 = vadd.xlane.f32.xlu0 %v524
    %v585 = vpop.xlane.xlu0 %584
    %586 = vadd.xlane.f32.xlu0 %v525
    %v587 = vpop.xlane.xlu0 %586
    %588 = vadd.xlane.f32.xlu0 %v526
    %v589 = vpop.xlane.xlu0 %588
    %590 = vadd.xlane.f32.xlu0 %v527
    %v591 = vpop.xlane.xlu0 %590
    %592 = vxpose.xlu0.b32.start [1/16] %v529, 128
    %593 = vxpose.xlu0.b32.cont [2/16] %v531, 128
    %594 = vxpose.xlu0.b32.cont [3/16] %v533, 128
    %595 = vxpose.xlu0.b32.cont [4/16] %v535, 128
    %596 = vxpose.xlu0.b32.cont [5/16] %v537, 128
    %597 = vxpose.xlu0.b32.cont [6/16] %v539, 128
    %598 = vxpose.xlu0.b32.cont [7/16] %v541, 128
    %599 = vxpose.xlu0.b32.cont [8/16] %v543, 128
    %600 = vxpose.xlu0.b32.cont [9/16] %v545, 128
    %601 = vxpose.xlu0.b32.cont [10/16] %v547, 128
    %602 = vxpose.xlu0.b32.cont [11/16] %v549, 128
    %603 = vxpose.xlu0.b32.cont [12/16] %v551, 128
    %604 = vxpose.xlu0.b32.cont [13/16] %v553, 128
    %605 = vxpose.xlu0.b32.cont [14/16] %v555, 128
    %606 = vxpose.xlu0.b32.cont [15/16] %v557, 128
    %607 = vxpose.xlu0.b32.end [16/16] %v559, 128
    %v608 = vpop.trf.xlu0
    %v609 = vpop.trf.xlu0
    %v610 = vpop.trf.xlu0
    %v611 = vpop.trf.xlu0
    %v612 = vpop.trf.xlu0
    %v613 = vpop.trf.xlu0
    %v614 = vpop.trf.xlu0
    %v615 = vpop.trf.xlu0
    %v616 = vpop.trf.xlu0
    %v617 = vpop.trf.xlu0
    %v618 = vpop.trf.xlu0
    %v619 = vpop.trf.xlu0
    %v620 = vpop.trf.xlu0
    %v621 = vpop.trf.xlu0
    %v622 = vpop.trf.xlu0
    %v623 = vpop.trf.xlu0
    %624 = vxpose.xlu0.b32.start [1/16] %v561, 128
    %625 = vxpose.xlu0.b32.cont [2/16] %v563, 128
    %626 = vxpose.xlu0.b32.cont [3/16] %v565, 128
    %627 = vxpose.xlu0.b32.cont [4/16] %v567, 128
    %628 = vxpose.xlu0.b32.cont [5/16] %v569, 128
    %629 = vxpose.xlu0.b32.cont [6/16] %v571, 128
    %630 = vxpose.xlu0.b32.cont [7/16] %v573, 128
    %631 = vxpose.xlu0.b32.cont [8/16] %v575, 128
    %632 = vxpose.xlu0.b32.cont [9/16] %v577, 128
    %633 = vxpose.xlu0.b32.cont [10/16] %v579, 128
    %634 = vxpose.xlu0.b32.cont [11/16] %v581, 128
    %635 = vxpose.xlu0.b32.cont [12/16] %v583, 128
    %636 = vxpose.xlu0.b32.cont [13/16] %v585, 128
    %637 = vxpose.xlu0.b32.cont [14/16] %v587, 128
    %638 = vxpose.xlu0.b32.cont [15/16] %v589, 128
    %639 = vxpose.xlu0.b32.end [16/16] %v591, 128
    %v640 = vpop.trf.xlu0
    %v641 = vpop.trf.xlu0
    %v642 = vpop.trf.xlu0
    %v643 = vpop.trf.xlu0
    %v644 = vpop.trf.xlu0
    %v645 = vpop.trf.xlu0
    %v646 = vpop.trf.xlu0
    %v647 = vpop.trf.xlu0
    %v648 = vpop.trf.xlu0
    %v649 = vpop.trf.xlu0
    %v650 = vpop.trf.xlu0
    %v651 = vpop.trf.xlu0
    %v652 = vpop.trf.xlu0
    %v653 = vpop.trf.xlu0
    %v654 = vpop.trf.xlu0
    %v655 = vpop.trf.xlu0
    %v658 = vcombine.low %v608, %v640
    %v660 = vunpack.c.l.s4 1966171168
    %v661 = vunpack.c.0.s8 %v660
    %v662 = vlaneseq
    %v663 = vshrl.u32 %v662, 7
    %v664 = vsub.s32 %v661, %v663
    %v665 = vrot.slane %v658, %v664
    %v667 = vunpack.c.l.s4 1966171168
    %v668 = vunpack.c.0.s8 %v667
    %v669 = vlaneseq
    %v670 = vshrl.u32 %v669, 7
    %v671 = vsub.s32 %v668, %v670
    %v672 = vrot.slane %v665, %v671
    %v674 = vlaneseq
    %vm675 = vcmp.ge.s32.totalorder %v674, 0
    %vm676 = vcmp.lt.s32.totalorder %v674, 256
    %vm677 = vmand %vm675, %vm676
    %678 = vst.msk [vmem:[#allocation4] sm:$0x3] %vm677, %v672
    %v679 = vpack.c.bf16 %v230, %v227
    %v680 = vpack.c.bf16 %v238, %v235
    %v681 = vpack.c.bf16 %v246, %v243
    %v682 = vpack.c.bf16 %v254, %v251
    %v683 = vpack.c.bf16 %v262, %v259
    %v684 = vpack.c.bf16 %v270, %v267
    %v685 = vpack.c.bf16 %v278, %v275
    %v686 = vpack.c.bf16 %v286, %v283
    %v687 = vpack.c.bf16 %v294, %v291
    %v688 = vpack.c.bf16 %v302, %v299
    %v689 = vpack.c.bf16 %v310, %v307
    %v690 = vpack.c.bf16 %v318, %v315
    %v691 = vpack.c.bf16 %v326, %v323
    %v692 = vpack.c.bf16 %v334, %v331
    %v693 = vpack.c.bf16 %v342, %v339
    %v694 = vpack.c.bf16 %v350, %v347
    %v711 = vunpack.c.l.b16 %v679
    %v712 = vunpack.c.h.b16 %v679
    %v713 = vunpack.c.l.b16 %v680
    %v714 = vunpack.c.h.b16 %v680
    %v715 = vunpack.c.l.b16 %v681
    %v716 = vunpack.c.h.b16 %v681
    %v717 = vunpack.c.l.b16 %v682
    %v718 = vunpack.c.h.b16 %v682
    %v719 = vunpack.c.l.b16 %v683
    %v720 = vunpack.c.h.b16 %v683
    %v721 = vunpack.c.l.b16 %v684
    %v722 = vunpack.c.h.b16 %v684
    %v723 = vunpack.c.l.b16 %v685
    %v724 = vunpack.c.h.b16 %v685
    %v725 = vunpack.c.l.b16 %v686
    %v726 = vunpack.c.h.b16 %v686
    %v727 = vunpack.c.l.b16 %v687
    %v728 = vunpack.c.h.b16 %v687
    %v729 = vunpack.c.l.b16 %v688
    %v730 = vunpack.c.h.b16 %v688
    %v731 = vunpack.c.l.b16 %v689
    %v732 = vunpack.c.h.b16 %v689
    %v733 = vunpack.c.l.b16 %v690
    %v734 = vunpack.c.h.b16 %v690
    %v735 = vunpack.c.l.b16 %v691
    %v736 = vunpack.c.h.b16 %v691
    %v737 = vunpack.c.l.b16 %v692
    %v738 = vunpack.c.h.b16 %v692
    %v739 = vunpack.c.l.b16 %v693
    %v740 = vunpack.c.h.b16 %v693
    %v741 = vunpack.c.l.b16 %v694
    %v742 = vunpack.c.h.b16 %v694
    %v743 = vpack.c.b16 %v711, %v711
    %v744 = vpack.c.b16 %v712, %v712
    %v745 = vpack.c.b16 %v713, %v713
    %v746 = vpack.c.b16 %v714, %v714
    %v747 = vpack.c.b16 %v715, %v715
    %v748 = vpack.c.b16 %v716, %v716
    %v749 = vpack.c.b16 %v717, %v717
    %v750 = vpack.c.b16 %v718, %v718
    %v751 = vpack.c.b16 %v719, %v719
    %v752 = vpack.c.b16 %v720, %v720
    %v753 = vpack.c.b16 %v721, %v721
    %v754 = vpack.c.b16 %v722, %v722
    %v755 = vpack.c.b16 %v723, %v723
    %v756 = vpack.c.b16 %v724, %v724
    %v757 = vpack.c.b16 %v725, %v725
    %v758 = vpack.c.b16 %v726, %v726
    %v759 = vpack.c.b16 %v727, %v727
    %v760 = vpack.c.b16 %v728, %v728
    %v761 = vpack.c.b16 %v729, %v729
    %v762 = vpack.c.b16 %v730, %v730
    %v763 = vpack.c.b16 %v731, %v731
    %v764 = vpack.c.b16 %v732, %v732
    %v765 = vpack.c.b16 %v733, %v733
    %v766 = vpack.c.b16 %v734, %v734
    %v767 = vpack.c.b16 %v735, %v735
    %v768 = vpack.c.b16 %v736, %v736
    %v769 = vpack.c.b16 %v737, %v737
    %v770 = vpack.c.b16 %v738, %v738
    %v771 = vpack.c.b16 %v739, %v739
    %v772 = vpack.c.b16 %v740, %v740
    %v773 = vpack.c.b16 %v741, %v741
    %v774 = vpack.c.b16 %v742, %v742
    %807 = vst [vmem:[#allocation2] sm:$0xf] %v743
    %808 = vst [vmem:[#allocation2 + $0x4] sm:$0xf] %v744
    %809 = vst [vmem:[#allocation2 + $0x8] sm:$0xf] %v745
    %810 = vst [vmem:[#allocation2 + $0xc] sm:$0xf] %v746
    %811 = vst [vmem:[#allocation2 + $0x10] sm:$0xf] %v747
    %812 = vst [vmem:[#allocation2 + $0x14] sm:$0xf] %v748
    %813 = vst [vmem:[#allocation2 + $0x18] sm:$0xf] %v749
    %814 = vst [vmem:[#allocation2 + $0x1c] sm:$0xf] %v750
    %815 = vst [vmem:[#allocation2 + $0x20] sm:$0xf] %v751
    %816 = vst [vmem:[#allocation2 + $0x24] sm:$0xf] %v752
    %817 = vst [vmem:[#allocation2 + $0x28] sm:$0xf] %v753
    %818 = vst [vmem:[#allocation2 + $0x2c] sm:$0xf] %v754
    %819 = vst [vmem:[#allocation2 + $0x30] sm:$0xf] %v755
    %820 = vst [vmem:[#allocation2 + $0x34] sm:$0xf] %v756
    %821 = vst [vmem:[#allocation2 + $0x38] sm:$0xf] %v757
    %822 = vst [vmem:[#allocation2 + $0x3c] sm:$0xf] %v758
    %823 = vst [vmem:[#allocation2 + $0x40] sm:$0xf] %v759
    %824 = vst [vmem:[#allocation2 + $0x44] sm:$0xf] %v760
    %825 = vst [vmem:[#allocation2 + $0x48] sm:$0xf] %v761
    %826 = vst [vmem:[#allocation2 + $0x4c] sm:$0xf] %v762
    %827 = vst [vmem:[#allocation2 + $0x50] sm:$0xf] %v763
    %828 = vst [vmem:[#allocation2 + $0x54] sm:$0xf] %v764
    %829 = vst [vmem:[#allocation2 + $0x58] sm:$0xf] %v765
    %830 = vst [vmem:[#allocation2 + $0x5c] sm:$0xf] %v766
    %831 = vst [vmem:[#allocation2 + $0x60] sm:$0xf] %v767
    %832 = vst [vmem:[#allocation2 + $0x64] sm:$0xf] %v768
    %833 = vst [vmem:[#allocation2 + $0x68] sm:$0xf] %v769
    %834 = vst [vmem:[#allocation2 + $0x6c] sm:$0xf] %v770
    %835 = vst [vmem:[#allocation2 + $0x70] sm:$0xf] %v771
    %836 = vst [vmem:[#allocation2 + $0x74] sm:$0xf] %v772
    %837 = vst [vmem:[#allocation2 + $0x78] sm:$0xf] %v773
    %838 = vst [vmem:[#allocation2 + $0x7c] sm:$0xf] %v774
    // Predicated region
    $region18: #{tpu_custom_call.1} parent=1 // pred_check
      _
    $region19: #{tpu_custom_call.1} parent=1 // pred_check_branch
      %840 = sbr.rel (0) target = $region21
    $region20: #{tpu_custom_call.1} parent=1 // pred_region
      %s842 = ssub.s32 2048, 2048
      %843 = vsyncadd [#allocation3], %s842
      %s844 = sshll.u32 [#allocation2], 4
      %s845 = int_to_ptr.vmem [resolvable:$true] %s844
      %850 = dma.vmem_to_hbm [thread:$0]  %s845, 2048, %s4, [#allocation3], 64, 64, 4
    $region21: #{tpu_custom_call.1} parent=1 // pred_fallthru
      _
    // Predicated region
    $region22: #{tpu_custom_call.1} parent=1 // pred_check
      _
    $region23: #{tpu_custom_call.1} parent=1 // pred_check_branch
      %852 = sbr.rel (0) target = $region25
    $region24: #{tpu_custom_call.1} parent=1 // pred_region
      _
    $region25: #{tpu_custom_call.1} parent=1 // pred_fallthru
      _
    // Predicated region
    $region26: #{tpu_custom_call.1} parent=1 // pred_check
      _
    $region27: #{tpu_custom_call.1} parent=1 // pred_check_branch
      %854 = sbr.rel (0) target = $region29
    $region28: #{tpu_custom_call.1} parent=1 // pred_region
      %s856 = ssub.s32 32, 32
      %857 = vsyncadd [#allocation5], %s856
      %s859 = sshll.u32 [#allocation4], 4
      %s860 = int_to_ptr.vmem [resolvable:$true] %s859
      %862 = dma.vmem_to_hbm [thread:$0]  %s860, 32, %s6, [#allocation5]
    $region29: #{tpu_custom_call.1} parent=1 // pred_fallthru
      _
    // Predicated region
    $region30: #{tpu_custom_call.1} parent=1 // pred_check
      _
    $region31: #{tpu_custom_call.1} parent=1 // pred_check_branch
      %864 = sbr.rel (0) target = $region33
    $region32: #{tpu_custom_call.1} parent=1 // pred_region
      %865 = dma.done [#allocation3], 2048
    $region33: #{tpu_custom_call.1} parent=1 // pred_fallthru
      _
    // Predicated region
    $region34: #{tpu_custom_call.1} parent=1 // pred_check
      _
    $region35: #{tpu_custom_call.1} parent=1 // pred_check_branch
      %867 = sbr.rel (0) target = $region37
    $region36: #{tpu_custom_call.1} parent=1 // pred_region
      _
    $region37: #{tpu_custom_call.1} parent=1 // pred_fallthru
      _
    // Predicated region
    $region38: #{tpu_custom_call.1} parent=1 // pred_check
      _
    $region39: #{tpu_custom_call.1} parent=1 // pred_check_branch
      %869 = sbr.rel (0) target = $region41
    $region40: #{tpu_custom_call.1} parent=1 // pred_region
      %870 = dma.done [#allocation5], 32
    $region41: #{tpu_custom_call.1} parent=1 // pred_fallthru
      _
    %871 = vsyncpa [#allocation3], 1
    %872 = vsyncpa [#allocation5], 1

</llo_original>
